<compile_context>
chip_gen: v6e
topology: v6e:2x2x1
jax: 0.10.0
libtpu: 0.0.40
codegen_flags: <defaults>
</compile_context>

<pallas_src>
import functools

import jax
import jax.numpy as jnp
from jax.experimental import pallas as pl
from jax.experimental.pallas import tpu as pltpu

ALPHA = 3.0
BETA = 3
PERMUTE_LEN = 4
EPS = 1e-12
_INT32_MAX = 2147483647


def _hard_dark_rank_kernel(s_ref, t_ref, sqs_ref, sqt_ref, o_ref,
                           *, alpha, beta, permute_len, tq, n):
    """One grid step: rows [blk*tq, blk*tq+tq) of the loss."""
    blk = pl.program_id(0)
    r0 = pl.multiple_of(blk * tq, tq)

    # Row blocks (sliced out of the resident full operands).
    s_blk = s_ref[pl.ds(r0, tq), :]                       # (TQ, Ds_pad)
    t_blk = t_ref[pl.ds(r0, tq), :]                       # (TQ, Dt_pad)
    s_full = s_ref[...]                                   # (N,  Ds_pad)
    t_full = t_ref[...]                                   # (N,  Dt_pad)

    # Column squared-norms, precomputed lane-major in the wrapper.
    sq_cols_s = sqs_ref[...]                              # (1, N)
    sq_cols_t = sqt_ref[...]                              # (1, N)
    # Row squared-norms from the blocks (tiny).
    sq_rows_s = jnp.sum(s_blk * s_blk, axis=1, keepdims=True)   # (TQ, 1)
    sq_rows_t = jnp.sum(t_blk * t_blk, axis=1, keepdims=True)   # (TQ, 1)

    # ---- two independent Gram tiles, contraction on the LAST axis of both
    # operands (no transposed operand materialized). -----------------------
    dn = (((1,), (1,)), ((), ()))
    prod_s = jax.lax.dot_general(s_blk, s_full, dn,
                                 preferred_element_type=jnp.float32)  # (TQ,N)
    prod_t = jax.lax.dot_general(t_blk, t_full, dn,
                                 preferred_element_type=jnp.float32)  # (TQ,N)

    def _score(sq_r, sq_c, prod):
        res = jnp.maximum(sq_r + sq_c - 2.0 * prod, EPS)
        d = jnp.sqrt(res)
        pw = res * d if beta == 3 else d ** beta          # d**3 w/o integer_pow
        return -alpha * pw

    score_student = _score(sq_rows_s, sq_cols_s, prod_s)  # (TQ, N)
    score_teacher = _score(sq_rows_t, sq_cols_t, prod_t)  # (TQ, N)
    # The diagonal is NOT forced to 0: the teacher diagonal (always the row
    # max in the reference) is masked out of the selection below, and the
    # student diagonal is never gathered, so module semantics are preserved.

    cols = jax.lax.broadcasted_iota(jnp.int32, (tq, n), 1)            # (TQ,N)
    row_ids = r0 + jax.lax.broadcasted_iota(jnp.int32, (tq, 1), 0)    # (TQ,1)

    # ---- pack (score, column) into one sortable int32 key ----------------
    # alpha > 0 and res >= EPS  =>  all teacher scores strictly negative, so
    # their int32 bitcast is negative and integer-ordered in REVERSE of the
    # float order: the row's max score is the row's min key.  The low
    # ceil(log2(N)) mantissa bits carry the column index, so a single
    # cross-lane min per round yields both the winner and its column
    # (ties break toward the smaller column, like a stable descending sort).
    idx_bits = max(1, (n - 1).bit_length())
    key_mask = jnp.int32(-(1 << idx_bits))
    sentinel = jnp.int32(_INT32_MAX)

    keys = (pltpu.bitcast(score_teacher, jnp.int32) & key_mask) | cols
    keys = jnp.where(cols == row_ids, sentinel, keys)     # drop self-match (k==0)

    # ---- iterative top-k teacher neighbours + student gather -------------
    ordered = []                                          # permute_len x (TQ, 1)
    for _ in range(permute_len):
        min_key = jnp.min(keys, axis=1, keepdims=True)    # one XLU reduce
        onehot = keys == min_key                          # exactly one True / row
        v = jnp.sum(jnp.where(onehot, score_student, 0.0),
                    axis=1, keepdims=True)                # gather, one XLU reduce
        ordered.append(v)
        keys = jnp.where(onehot, sentinel, keys)          # mask for next round

    # ---- Plackett-Luce listwise log-likelihood (reverse running logaddexp)
    lse = ordered[-1]
    log_prob = jnp.zeros_like(lse)                        # last term is exactly 0
    for i in range(permute_len - 2, -1, -1):
        m = jnp.maximum(ordered[i], lse)
        lse = m + jnp.log(jnp.exp(ordered[i] - m) + jnp.exp(lse - m))
        log_prob = log_prob + (ordered[i] - lse)

    o_ref[...] = -log_prob                                # (TQ, 1) per-row loss


def _pick_block_rows(n):
    """Largest row-tile dividing n that keeps per-block (TQ,N) work bounded."""
    if n <= 256:
        return n
    budget = 24 * 1024 * 1024          # ~24 MiB for ~10 f32 (TQ, N) buffers
    cap = max(8, budget // (40 * n))
    for tq in (512, 256, 128, 64, 32, 16, 8):
        if tq <= cap and n % tq == 0:
            return tq
    for tq in (512, 256, 128, 64, 32, 16, 8):
        if n % tq == 0:
            return tq
    return n


def _pad_features(x):
    """Zero-pad feature dim to a multiple of 128 (MXU depth alignment)."""
    x = jnp.asarray(x, jnp.float32)
    d = x.shape[1]
    dp = max(128, ((d + 127) // 128) * 128)
    if dp != d:
        x = jnp.pad(x, ((0, 0), (0, dp - d)))
    return x


def hard_dark_rank(student, teacher, alpha=ALPHA, beta=BETA,
                   permute_len=PERMUTE_LEN, block_rows=None):
    n = student.shape[0]
    assert teacher.shape[0] == n, "student/teacher batch mismatch"
    assert permute_len + 1 <= n, "need at least permute_len + 1 embeddings"
    # Packed-key selection requires strictly negative scores (alpha > 0).
    assert float(alpha) > 0, "HardDarkRank Pallas kernel requires alpha > 0"

    tq = block_rows if block_rows is not None else _pick_block_rows(n)
    assert n % tq == 0, "block_rows must divide the batch size"
    num_blocks = n // tq

    s = _pad_features(student)
    t = _pad_features(teacher)
    dp_s, dp_t = s.shape[1], t.shape[1]

    # Column squared-norms, precomputed once, lane-major (1, N).
    sq_s = jnp.sum(jnp.asarray(student, jnp.float32) ** 2, axis=1)[None, :]
    sq_t = jnp.sum(jnp.asarray(teacher, jnp.float32) ** 2, axis=1)[None, :]

    # Scoped-VMEM sized to the real working set (resident operands are
    # conservatively counted double-buffered).
    est = (2 * 4 * n * (dp_s + dp_t)        # resident student / teacher
           + 2 * 4 * 2 * n                  # sq rows
           + 2 * 4 * tq                     # output block
           + 10 * 4 * tq * n                # prod / score / key tiles + temps
           + (4 << 20))                     # slack
    vmem_limit = int(min(max(est, 32 << 20), 120 << 20))

    kernel = functools.partial(_hard_dark_rank_kernel,
                               alpha=float(alpha), beta=int(beta),
                               permute_len=int(permute_len), tq=tq, n=n)

    neg_log_prob = pl.pallas_call(
        kernel,
        out_shape=jax.ShapeDtypeStruct((n, 1), jnp.float32),
        grid=(num_blocks,),
        in_specs=[
            pl.BlockSpec((n, dp_s), lambda i: (0, 0)),    # resident across grid
            pl.BlockSpec((n, dp_t), lambda i: (0, 0)),    # resident across grid
            pl.BlockSpec((1, n), lambda i: (0, 0)),
            pl.BlockSpec((1, n), lambda i: (0, 0)),
        ],
        out_specs=pl.BlockSpec((tq, 1), lambda i: (i, 0)),
        compiler_params=pltpu.CompilerParams(
            dimension_semantics=("parallel",),            # megacore on v7x
            vmem_limit_bytes=vmem_limit),
    )(s, t, sq_s, sq_t)

    return jnp.mean(neg_log_prob)


def _reference(student, teacher, alpha=ALPHA, beta=BETA,
               permute_len=PERMUTE_LEN):
    """Pure-JAX reference mirroring the PyTorch forward."""
    def pdist_ref(e):
        sq = jnp.sum(e ** 2, axis=1)
        prod = e @ e.T
        res = jnp.sqrt(jnp.maximum(sq[:, None] + sq[None, :] - 2 * prod, EPS))
        n = e.shape[0]
        return res.at[jnp.arange(n), jnp.arange(n)].set(0.0)

    score_t = -alpha * pdist_ref(jnp.asarray(teacher, jnp.float32)) ** beta
    score_s = -alpha * pdist_ref(jnp.asarray(student, jnp.float32)) ** beta
    permute_idx = jnp.argsort(-score_t, axis=1)[:, 1:permute_len + 1]
    ordered = jnp.take_along_axis(score_s, permute_idx, axis=1)
    lses = jnp.stack(
        [jax.nn.logsumexp(ordered[:, i:], axis=1) for i in range(permute_len)],
        axis=1)
    log_prob = jnp.sum(ordered - lses, axis=1)
    return jnp.mean(-log_prob)


if __name__ == "__main__":
    key = jax.random.PRNGKey(0)
    k1, k2, k3, k4 = jax.random.split(key, 4)

    # Demo shape consistent with the module: batch of 8 embeddings, dim 32.
    N, D = 8, 32
    student = jax.random.normal(k1, (N, D), dtype=jnp.float32)
    teacher = jax.random.normal(k2, (N, D), dtype=jnp.float32)

    loss = hard_dark_rank(student, teacher)
    jax.block_until_ready(loss)
    ref = _reference(student, teacher)
    assert jnp.allclose(loss, ref, rtol=1e-4, atol=1e-4), (loss, ref)

    # Exercise the multi-block grid path (2 blocks) with mismatched,
    # non-128-aligned feature dims (padding path).
    N2 = 16
    student2 = jax.random.normal(k3, (N2, 40), dtype=jnp.float32)
    teacher2 = jax.random.normal(k4, (N2, 24), dtype=jnp.float32)
    loss2 = hard_dark_rank(student2, teacher2, block_rows=8)
    jax.block_until_ready(loss2)
    ref2 = _reference(student2, teacher2)
    assert jnp.allclose(loss2, ref2, rtol=1e-4, atol=1e-4), (loss2, ref2)

    print("KERNEL_OK")
</pallas_src>

<mosaic_0001>
module attributes {stable_mosaic.version = 11 : i64} {
  func.func @_hard_dark_rank_kernel(%arg0: i32, %arg1: memref<8x128xf32, #tpu.memory_space<vmem>>, %arg2: memref<8x128xf32, #tpu.memory_space<vmem>>, %arg3: memref<1x8xf32, #tpu.memory_space<vmem>>, %arg4: memref<1x8xf32, #tpu.memory_space<vmem>>, %arg5: memref<8x1xf32, #tpu.memory_space<vmem>>) attributes {dimension_semantics = [#tpu.dimension_semantics<parallel>], iteration_bounds = array<i64: 1>, scalar_prefetch = 0 : i64, scratch_operands = 0 : i64, tpu.core_type = #tpu.core_type<tc>, window_params = [{pipeline_mode = #tpu.pipeline_mode<synchronous>, transform_indices = @transform_0, window_bounds = array<i64: 8, 128>}, {pipeline_mode = #tpu.pipeline_mode<synchronous>, transform_indices = @transform_1, window_bounds = array<i64: 8, 128>}, {pipeline_mode = #tpu.pipeline_mode<synchronous>, transform_indices = @transform_2, window_bounds = array<i64: 1, 8>}, {pipeline_mode = #tpu.pipeline_mode<synchronous>, transform_indices = @transform_3, window_bounds = array<i64: 1, 8>}, {transform_indices = @transform_4, window_bounds = array<i64: 8, 1>}]} {
    %c8_i32 = arith.constant 8 : i32
    %0 = arith.muli %arg0, %c8_i32 : i32
    %1 = tpu.assume_multiple %0, 8 : i32
    %2 = arith.index_cast %1 : i32 to index
    %c0 = arith.constant 0 : index
    %3 = vector.load %arg1[%2, %c0] : memref<8x128xf32, #tpu.memory_space<vmem>>, vector<8x128xf32>
    %4 = arith.index_cast %1 : i32 to index
    %c0_0 = arith.constant 0 : index
    %5 = vector.load %arg2[%4, %c0_0] : memref<8x128xf32, #tpu.memory_space<vmem>>, vector<8x128xf32>
    %c0_1 = arith.constant 0 : index
    %c0_2 = arith.constant 0 : index
    %6 = vector.load %arg1[%c0_1, %c0_2] : memref<8x128xf32, #tpu.memory_space<vmem>>, vector<8x128xf32>
    %c0_3 = arith.constant 0 : index
    %c0_4 = arith.constant 0 : index
    %7 = vector.load %arg2[%c0_3, %c0_4] : memref<8x128xf32, #tpu.memory_space<vmem>>, vector<8x128xf32>
    %c0_5 = arith.constant 0 : index
    %c0_6 = arith.constant 0 : index
    %8 = vector.load %arg3[%c0_5, %c0_6] : memref<1x8xf32, #tpu.memory_space<vmem>>, vector<1x8xf32>
    %c0_7 = arith.constant 0 : index
    %c0_8 = arith.constant 0 : index
    %9 = vector.load %arg4[%c0_7, %c0_8] : memref<1x8xf32, #tpu.memory_space<vmem>>, vector<1x8xf32>
    %10 = arith.mulf %3, %3 : vector<8x128xf32>
    %cst = arith.constant dense<0.000000e+00> : vector<8xf32>
    %11 = vector.multi_reduction <add>, %10, %cst [1] : vector<8x128xf32> to vector<8xf32>
    %12 = vector.shape_cast %11 : vector<8xf32> to vector<8x1xf32>
    %13 = arith.mulf %5, %5 : vector<8x128xf32>
    %cst_9 = arith.constant dense<0.000000e+00> : vector<8xf32>
    %14 = vector.multi_reduction <add>, %13, %cst_9 [1] : vector<8x128xf32> to vector<8xf32>
    %15 = vector.shape_cast %14 : vector<8xf32> to vector<8x1xf32>
    %cst_10 = arith.constant dense<0.000000e+00> : vector<8x8xf32>
    %16 = tpu.matmul %3, %6, %cst_10 {dimension_numbers = #tpu.dot_dimension_numbers<[1], [1], [0], [0], [0, 0, 1, 0], [], []>} : vector<8x128xf32>, vector<8x128xf32>, vector<8x8xf32> -> vector<8x8xf32>
    %cst_11 = arith.constant dense<0.000000e+00> : vector<8x8xf32>
    %17 = tpu.matmul %5, %7, %cst_11 {dimension_numbers = #tpu.dot_dimension_numbers<[1], [1], [0], [0], [0, 0, 1, 0], [], []>} : vector<8x128xf32>, vector<8x128xf32>, vector<8x8xf32> -> vector<8x8xf32>
    %18 = vector.broadcast %12 : vector<8x1xf32> to vector<8x8xf32>
    %19 = vector.broadcast %8 : vector<1x8xf32> to vector<8x8xf32>
    %20 = arith.addf %18, %19 : vector<8x8xf32>
    %cst_12 = arith.constant 2.000000e+00 : f32
    %21 = vector.broadcast %cst_12 : f32 to vector<8x8xf32>
    %22 = arith.mulf %21, %16 : vector<8x8xf32>
    %23 = arith.subf %20, %22 : vector<8x8xf32>
    %cst_13 = arith.constant 9.99999996E-13 : f32
    %24 = vector.broadcast %cst_13 : f32 to vector<8x8xf32>
    %25 = arith.maximumf %23, %24 : vector<8x8xf32>
    %26 = math.sqrt %25 : vector<8x8xf32>
    %27 = arith.mulf %25, %26 : vector<8x8xf32>
    %cst_14 = arith.constant -3.000000e+00 : f32
    %28 = vector.broadcast %cst_14 : f32 to vector<8x8xf32>
    %29 = arith.mulf %28, %27 : vector<8x8xf32>
    %30 = vector.broadcast %15 : vector<8x1xf32> to vector<8x8xf32>
    %31 = vector.broadcast %9 : vector<1x8xf32> to vector<8x8xf32>
    %32 = arith.addf %30, %31 : vector<8x8xf32>
    %cst_15 = arith.constant 2.000000e+00 : f32
    %33 = vector.broadcast %cst_15 : f32 to vector<8x8xf32>
    %34 = arith.mulf %33, %17 : vector<8x8xf32>
    %35 = arith.subf %32, %34 : vector<8x8xf32>
    %cst_16 = arith.constant 9.99999996E-13 : f32
    %36 = vector.broadcast %cst_16 : f32 to vector<8x8xf32>
    %37 = arith.maximumf %35, %36 : vector<8x8xf32>
    %38 = math.sqrt %37 : vector<8x8xf32>
    %39 = arith.mulf %37, %38 : vector<8x8xf32>
    %cst_17 = arith.constant -3.000000e+00 : f32
    %40 = vector.broadcast %cst_17 : f32 to vector<8x8xf32>
    %41 = arith.mulf %40, %39 : vector<8x8xf32>
    %42 = tpu.iota {dimensions = array<i32: 1>} : vector<8x8xi32>
    %43 = tpu.iota {dimensions = array<i32: 0>} : vector<8x1xi32>
    %44 = vector.broadcast %1 : i32 to vector<8x1xi32>
    %45 = arith.addi %44, %43 : vector<8x1xi32>
    %46 = tpu.bitcast %41 : vector<8x8xf32> -> vector<8x8xi32>
    %c-8_i32 = arith.constant -8 : i32
    %47 = vector.broadcast %c-8_i32 : i32 to vector<8x8xi32>
    %48 = arith.andi %46, %47 : vector<8x8xi32>
    %49 = arith.ori %48, %42 : vector<8x8xi32>
    %50 = vector.broadcast %45 : vector<8x1xi32> to vector<8x8xi32>
    %51 = arith.cmpi eq, %42, %50 : vector<8x8xi32>
    %c2147483647_i32 = arith.constant 2147483647 : i32
    %52 = vector.broadcast %c2147483647_i32 : i32 to vector<8x8xi32>
    %53 = arith.select %51, %52, %49 : vector<8x8xi1>, vector<8x8xi32>
    %cst_18 = arith.constant dense<2147483647> : vector<8xi32>
    %54 = vector.multi_reduction <minsi>, %53, %cst_18 [1] : vector<8x8xi32> to vector<8xi32>
    %55 = vector.shape_cast %54 : vector<8xi32> to vector<8x1xi32>
    %56 = vector.broadcast %55 : vector<8x1xi32> to vector<8x8xi32>
    %57 = arith.cmpi eq, %53, %56 : vector<8x8xi32>
    %cst_19 = arith.constant 0.000000e+00 : f32
    %58 = vector.broadcast %cst_19 : f32 to vector<8x8xf32>
    %59 = arith.select %57, %29, %58 : vector<8x8xi1>, vector<8x8xf32>
    %cst_20 = arith.constant dense<0.000000e+00> : vector<8xf32>
    %60 = vector.multi_reduction <add>, %59, %cst_20 [1] : vector<8x8xf32> to vector<8xf32>
    %61 = vector.shape_cast %60 : vector<8xf32> to vector<8x1xf32>
    %c2147483647_i32_21 = arith.constant 2147483647 : i32
    %62 = vector.broadcast %c2147483647_i32_21 : i32 to vector<8x8xi32>
    %63 = arith.select %57, %62, %53 : vector<8x8xi1>, vector<8x8xi32>
    %cst_22 = arith.constant dense<2147483647> : vector<8xi32>
    %64 = vector.multi_reduction <minsi>, %63, %cst_22 [1] : vector<8x8xi32> to vector<8xi32>
    %65 = vector.shape_cast %64 : vector<8xi32> to vector<8x1xi32>
    %66 = vector.broadcast %65 : vector<8x1xi32> to vector<8x8xi32>
    %67 = arith.cmpi eq, %63, %66 : vector<8x8xi32>
    %cst_23 = arith.constant 0.000000e+00 : f32
    %68 = vector.broadcast %cst_23 : f32 to vector<8x8xf32>
    %69 = arith.select %67, %29, %68 : vector<8x8xi1>, vector<8x8xf32>
    %cst_24 = arith.constant dense<0.000000e+00> : vector<8xf32>
    %70 = vector.multi_reduction <add>, %69, %cst_24 [1] : vector<8x8xf32> to vector<8xf32>
    %71 = vector.shape_cast %70 : vector<8xf32> to vector<8x1xf32>
    %c2147483647_i32_25 = arith.constant 2147483647 : i32
    %72 = vector.broadcast %c2147483647_i32_25 : i32 to vector<8x8xi32>
    %73 = arith.select %67, %72, %63 : vector<8x8xi1>, vector<8x8xi32>
    %cst_26 = arith.constant dense<2147483647> : vector<8xi32>
    %74 = vector.multi_reduction <minsi>, %73, %cst_26 [1] : vector<8x8xi32> to vector<8xi32>
    %75 = vector.shape_cast %74 : vector<8xi32> to vector<8x1xi32>
    %76 = vector.broadcast %75 : vector<8x1xi32> to vector<8x8xi32>
    %77 = arith.cmpi eq, %73, %76 : vector<8x8xi32>
    %cst_27 = arith.constant 0.000000e+00 : f32
    %78 = vector.broadcast %cst_27 : f32 to vector<8x8xf32>
    %79 = arith.select %77, %29, %78 : vector<8x8xi1>, vector<8x8xf32>
    %cst_28 = arith.constant dense<0.000000e+00> : vector<8xf32>
    %80 = vector.multi_reduction <add>, %79, %cst_28 [1] : vector<8x8xf32> to vector<8xf32>
    %81 = vector.shape_cast %80 : vector<8xf32> to vector<8x1xf32>
    %c2147483647_i32_29 = arith.constant 2147483647 : i32
    %82 = vector.broadcast %c2147483647_i32_29 : i32 to vector<8x8xi32>
    %83 = arith.select %77, %82, %73 : vector<8x8xi1>, vector<8x8xi32>
    %cst_30 = arith.constant dense<2147483647> : vector<8xi32>
    %84 = vector.multi_reduction <minsi>, %83, %cst_30 [1] : vector<8x8xi32> to vector<8xi32>
    %85 = vector.shape_cast %84 : vector<8xi32> to vector<8x1xi32>
    %86 = vector.broadcast %85 : vector<8x1xi32> to vector<8x8xi32>
    %87 = arith.cmpi eq, %83, %86 : vector<8x8xi32>
    %cst_31 = arith.constant 0.000000e+00 : f32
    %88 = vector.broadcast %cst_31 : f32 to vector<8x8xf32>
    %89 = arith.select %87, %29, %88 : vector<8x8xi1>, vector<8x8xf32>
    %cst_32 = arith.constant dense<0.000000e+00> : vector<8xf32>
    %90 = vector.multi_reduction <add>, %89, %cst_32 [1] : vector<8x8xf32> to vector<8xf32>
    %91 = vector.shape_cast %90 : vector<8xf32> to vector<8x1xf32>
    %cst_33 = arith.constant 0.000000e+00 : f32
    %92 = vector.broadcast %cst_33 : f32 to vector<8x1xf32>
    %93 = arith.maximumf %81, %91 : vector<8x1xf32>
    %94 = arith.subf %81, %93 : vector<8x1xf32>
    %95 = math.exp %94 : vector<8x1xf32>
    %96 = arith.subf %91, %93 : vector<8x1xf32>
    %97 = math.exp %96 : vector<8x1xf32>
    %98 = arith.addf %95, %97 : vector<8x1xf32>
    %99 = math.log %98 : vector<8x1xf32>
    %100 = arith.addf %93, %99 : vector<8x1xf32>
    %101 = arith.subf %81, %100 : vector<8x1xf32>
    %102 = arith.addf %92, %101 : vector<8x1xf32>
    %103 = arith.maximumf %71, %100 : vector<8x1xf32>
    %104 = arith.subf %71, %103 : vector<8x1xf32>
    %105 = math.exp %104 : vector<8x1xf32>
    %106 = arith.subf %100, %103 : vector<8x1xf32>
    %107 = math.exp %106 : vector<8x1xf32>
    %108 = arith.addf %105, %107 : vector<8x1xf32>
    %109 = math.log %108 : vector<8x1xf32>
    %110 = arith.addf %103, %109 : vector<8x1xf32>
    %111 = arith.subf %71, %110 : vector<8x1xf32>
    %112 = arith.addf %102, %111 : vector<8x1xf32>
    %113 = arith.maximumf %61, %110 : vector<8x1xf32>
    %114 = arith.subf %61, %113 : vector<8x1xf32>
    %115 = math.exp %114 : vector<8x1xf32>
    %116 = arith.subf %110, %113 : vector<8x1xf32>
    %117 = math.exp %116 : vector<8x1xf32>
    %118 = arith.addf %115, %117 : vector<8x1xf32>
    %119 = math.log %118 : vector<8x1xf32>
    %120 = arith.addf %113, %119 : vector<8x1xf32>
    %121 = arith.subf %61, %120 : vector<8x1xf32>
    %122 = arith.addf %112, %121 : vector<8x1xf32>
    %cst_34 = arith.constant 0.000000e+00 : f32
    %123 = vector.broadcast %cst_34 : f32 to vector<8x1xf32>
    %124 = arith.subf %123, %122 : vector<8x1xf32>
    %c0_35 = arith.constant 0 : index
    %c0_36 = arith.constant 0 : index
    %125 = vector.load %arg5[%c0_35, %c0_36] : memref<8x1xf32, #tpu.memory_space<vmem>>, vector<8x1xf32>
    tpu.vector_store %arg5[%c0_35, %c0_36], %124 {strides = array<i32>} : memref<8x1xf32, #tpu.memory_space<vmem>>, vector<8x1xf32>,
    return
  }
  func.func @transform_0(%arg0: i32) -> (i32, i32) {
    %c0_i32 = arith.constant 0 : i32
    %c0_i32_0 = arith.constant 0 : i32
    %c0_i32_1 = arith.constant 0 : i32
    return %c0_i32, %c0_i32_0 : i32, i32
  }
  func.func @transform_1(%arg0: i32) -> (i32, i32) {
    %c0_i32 = arith.constant 0 : i32
    %c0_i32_0 = arith.constant 0 : i32
    %c0_i32_1 = arith.constant 0 : i32
    return %c0_i32, %c0_i32_0 : i32, i32
  }
  func.func @transform_2(%arg0: i32) -> (i32, i32) {
    %c0_i32 = arith.constant 0 : i32
    %c0_i32_0 = arith.constant 0 : i32
    %c0_i32_1 = arith.constant 0 : i32
    return %c0_i32, %c0_i32_0 : i32, i32
  }
  func.func @transform_3(%arg0: i32) -> (i32, i32) {
    %c0_i32 = arith.constant 0 : i32
    %c0_i32_0 = arith.constant 0 : i32
    %c0_i32_1 = arith.constant 0 : i32
    return %c0_i32, %c0_i32_0 : i32, i32
  }
  func.func @transform_4(%arg0: i32) -> (i32, i32) {
    %c0_i32 = arith.constant 0 : i32
    %c0_i32_0 = arith.constant 0 : i32
    return %arg0, %c0_i32 : i32, i32
  }
}

</mosaic_0001>

<llo_original>
// kernel: tpu_custom_call.1
$region0: #{tpu_custom_call.1}
  #allocation0 [shape = 'u32[]', space=smem, size = 0x4, offset = 0x4, fixed_abs, tag = 'smem constant byte address 0x4 - core index']
  #allocation1 [shape = 'u32[144,128]{1,0:T(1,128)}', space=vmem, size = 0x12000, scoped, tag = 'internal scratch']
  %s0 = inlined_call_operand.hbm [shape: f32[8,128], index: 0, kind: input, shape index: {}]
  %s1 = inlined_call_operand.hbm [shape: f32[8,128], index: 1, kind: input, shape index: {}]
  %s2 = inlined_call_operand.vmem [shape: f32[1,8], index: 2, kind: input, shape index: {}]
  %s3 = inlined_call_operand.vmem [shape: f32[1,8], index: 3, kind: input, shape index: {}]
  %s4 = inlined_call_operand.vmem [shape: f32[8,1], index: 4, kind: output, shape index: {}]
  %s5 = sld [smem:[#allocation0]]
  $region34: #{tpu_custom_call.1} parent=0
    _
  %s7 = ssub.s32 1, %s5
  %s8 = scalar_select 0, %s7, %s5
  $region1: #{tpu_custom_call.1} parent=0
    #allocation2 [shape = 'u8[4096]{0}', space=vmem, size = 0x1000, scoped, tag = 'input window, operand 0, single buffered']
    #allocation3 [shape = 's32[1]{0}', space=sflag, size = 0x4, scoped, tag = 'scoped memory for tpu_custom_call.1']
    #allocation4 [shape = 'u8[4096]{0}', space=vmem, size = 0x1000, scoped, tag = 'input window, operand 1, single buffered']
    #allocation5 [shape = 's32[1]{0}', space=sflag, size = 0x4, scoped, tag = 'scoped memory for tpu_custom_call.1']
    %9 = vsyncpa [#allocation3], 0
    %10 = vsyncpa [#allocation5], 0
    // Predicated region
    $region2: #{tpu_custom_call.1} parent=1 // pred_check
      _
    $region3: #{tpu_custom_call.1} parent=1 // pred_check_branch
      %12 = sbr.rel (0) target = $region5
    $region4: #{tpu_custom_call.1} parent=1 // pred_region
      %s14 = ssub.s32 128, 128
      %15 = vsyncadd [#allocation3], %s14
      %s17 = sshll.u32 [#allocation2], 4
      %s18 = int_to_ptr.vmem [resolvable:$true] %s17
      %20 = dma.hbm_to_vmem [thread:$0]  %s0, 128, %s18, [#allocation3]
    $region5: #{tpu_custom_call.1} parent=1 // pred_fallthru
      _
    // Predicated region
    $region6: #{tpu_custom_call.1} parent=1 // pred_check
      _
    $region7: #{tpu_custom_call.1} parent=1 // pred_check_branch
      %22 = sbr.rel (0) target = $region9
    $region8: #{tpu_custom_call.1} parent=1 // pred_region
      %s24 = ssub.s32 128, 128
      %25 = vsyncadd [#allocation5], %s24
      %s27 = sshll.u32 [#allocation4], 4
      %s28 = int_to_ptr.vmem [resolvable:$true] %s27
      %30 = dma.hbm_to_vmem [thread:$0]  %s1, 128, %s28, [#allocation5]
    $region9: #{tpu_custom_call.1} parent=1 // pred_fallthru
      _
    // Predicated region
    $region10: #{tpu_custom_call.1} parent=1 // pred_check
      _
    $region11: #{tpu_custom_call.1} parent=1 // pred_check_branch
      %32 = sbr.rel (0) target = $region13
    $region12: #{tpu_custom_call.1} parent=1 // pred_region
      _
    $region13: #{tpu_custom_call.1} parent=1 // pred_fallthru
      _
    // Predicated region
    $region14: #{tpu_custom_call.1} parent=1 // pred_check
      _
    $region15: #{tpu_custom_call.1} parent=1 // pred_check_branch
      %34 = sbr.rel (0) target = $region17
    $region16: #{tpu_custom_call.1} parent=1 // pred_region
      _
    $region17: #{tpu_custom_call.1} parent=1 // pred_fallthru
      _
    // Predicated region
    $region18: #{tpu_custom_call.1} parent=1 // pred_check
      _
    $region19: #{tpu_custom_call.1} parent=1 // pred_check_branch
      %36 = sbr.rel (0) target = $region21
    $region20: #{tpu_custom_call.1} parent=1 // pred_region
      %37 = dma.done [#allocation3], 128
    $region21: #{tpu_custom_call.1} parent=1 // pred_fallthru
      _
    // Predicated region
    $region22: #{tpu_custom_call.1} parent=1 // pred_check
      _
    $region23: #{tpu_custom_call.1} parent=1 // pred_check_branch
      %39 = sbr.rel (0) target = $region25
    $region24: #{tpu_custom_call.1} parent=1 // pred_region
      %40 = dma.done [#allocation5], 128
    $region25: #{tpu_custom_call.1} parent=1 // pred_fallthru
      _
    %s41 = smul.u32 0, 8
    %s42 = scalar_lea.vmem [#allocation2], %s41
    %v43 = vld [vmem:[%s42] sm:$0xff]
    %s44 = scalar_lea.vmem [#allocation4], %s41
    %v45 = vld [vmem:[%s44] sm:$0xff]
    %v46 = vld [vmem:[#allocation2] sm:$0xff]
    %v47 = vld [vmem:[#allocation4] sm:$0xff]
    %v48 = vld [vmem:[%s2] sm:$0x1]
    %v49 = vld [vmem:[%s3] sm:$0x1]
    %v50 = vmul.f32 %v43, %v43
    %51 = vadd.xlane.f32.xlu0 %v50
    %v52 = vpop.xlane.xlu0 %51
    %v53 = vmul.f32 %v45, %v45
    %54 = vadd.xlane.f32.xlu0 %v53
    %v55 = vpop.xlane.xlu0 %54
    %56 = vmatprep.subr.mxu0 0.0
    %57 = vmatpush1.xpose.msra.mxu0 0.0
    %58 = vmatprep.subr.mxu0 0.0
    %59 = vmatpush1.xpose.msra.mxu0 0.0
    %60 = vmatprep.subr.mxu0 0.0
    %61 = vmatpush1.xpose.msra.mxu0 0.0
    %62 = vmatprep.subr.mxu0 0.0
    %63 = vmatpush1.xpose.msra.mxu0 0.0
    %64 = vmatprep.subr.mxu0 0.0
    %65 = vmatpush1.xpose.msra.mxu0 0.0
    %66 = vmatprep.subr.mxu0 0.0
    %67 = vmatpush1.xpose.msra.mxu0 0.0
    %68 = vmatprep.subr.mxu0 0.0
    %69 = vmatpush1.xpose.msra.mxu0 0.0
    %70 = vmatprep.subr.mxu0 0.0
    %71 = vmatpush1.xpose.msra.mxu0 0.0
    %72 = vmatprep.subr.mxu0 0.0
    %73 = vmatpush1.xpose.msra.mxu0 0.0
    %74 = vmatprep.subr.mxu0 0.0
    %75 = vmatpush1.xpose.msra.mxu0 0.0
    %76 = vmatprep.subr.mxu0 0.0
    %77 = vmatpush1.xpose.msra.mxu0 0.0
    %78 = vmatprep.subr.mxu0 0.0
    %79 = vmatpush1.xpose.msra.mxu0 0.0
    %80 = vmatprep.subr.mxu0 0.0
    %81 = vmatpush1.xpose.msra.mxu0 0.0
    %82 = vmatprep.subr.mxu0 0.0
    %83 = vmatpush1.xpose.msra.mxu0 0.0
    %84 = vmatprep.subr.mxu0 0.0
    %85 = vmatpush1.xpose.msra.mxu0 0.0
    %86 = vmatprep.subr.mxu0 0.0
    %87 = vmatpush1.xpose.msra.mxu0 %v46
    %88 = vmatprep.subr.mxu0 0.0
    %89 = vmatpush2.xpose.msra.mxu0 0.0
    %90 = vmatprep.subr.mxu0 0.0
    %91 = vmatpush2.xpose.msra.mxu0 0.0
    %92 = vmatprep.subr.mxu0 0.0
    %93 = vmatpush2.xpose.msra.mxu0 0.0
    %94 = vmatprep.subr.mxu0 0.0
    %95 = vmatpush2.xpose.msra.mxu0 0.0
    %96 = vmatprep.subr.mxu0 0.0
    %97 = vmatpush2.xpose.msra.mxu0 0.0
    %98 = vmatprep.subr.mxu0 0.0
    %99 = vmatpush2.xpose.msra.mxu0 0.0
    %100 = vmatprep.subr.mxu0 0.0
    %101 = vmatpush2.xpose.msra.mxu0 0.0
    %102 = vmatprep.subr.mxu0 0.0
    %103 = vmatpush2.xpose.msra.mxu0 0.0
    %104 = vmatprep.subr.mxu0 0.0
    %105 = vmatpush2.xpose.msra.mxu0 0.0
    %106 = vmatprep.subr.mxu0 0.0
    %107 = vmatpush2.xpose.msra.mxu0 0.0
    %108 = vmatprep.subr.mxu0 0.0
    %109 = vmatpush2.xpose.msra.mxu0 0.0
    %110 = vmatprep.subr.mxu0 0.0
    %111 = vmatpush2.xpose.msra.mxu0 0.0
    %112 = vmatprep.subr.mxu0 0.0
    %113 = vmatpush2.xpose.msra.mxu0 0.0
    %114 = vmatprep.subr.mxu0 0.0
    %115 = vmatpush2.xpose.msra.mxu0 0.0
    %116 = vmatprep.subr.mxu0 0.0
    %117 = vmatpush2.xpose.msra.mxu0 0.0
    %118 = vmatprep.subr.mxu0 0.0
    %119 = vmatpush2.xpose.msra.mxu0 0.0
    %120 = vmatprep.mubr.f32.mxu0 0.0
    %121 = vmatmul.mubr.f32.gmra.mxu0 %v43
    %v122 = vpop.f32.mrf.mxu0
    %v123 = vadd.f32 0.0, %v122
    %v124 = vpop.f32.mrf.mxu0
    %125 = vdwg.mxu0
    %126 = vmatprep.subr.mxu0 0.0
    %127 = vmatpush1.xpose.msra.mxu0 0.0
    %128 = vmatprep.subr.mxu0 0.0
    %129 = vmatpush1.xpose.msra.mxu0 0.0
    %130 = vmatprep.subr.mxu0 0.0
    %131 = vmatpush1.xpose.msra.mxu0 0.0
    %132 = vmatprep.subr.mxu0 0.0
    %133 = vmatpush1.xpose.msra.mxu0 0.0
    %134 = vmatprep.subr.mxu0 0.0
    %135 = vmatpush1.xpose.msra.mxu0 0.0
    %136 = vmatprep.subr.mxu0 0.0
    %137 = vmatpush1.xpose.msra.mxu0 0.0
    %138 = vmatprep.subr.mxu0 0.0
    %139 = vmatpush1.xpose.msra.mxu0 0.0
    %140 = vmatprep.subr.mxu0 0.0
    %141 = vmatpush1.xpose.msra.mxu0 0.0
    %142 = vmatprep.subr.mxu0 0.0
    %143 = vmatpush1.xpose.msra.mxu0 0.0
    %144 = vmatprep.subr.mxu0 0.0
    %145 = vmatpush1.xpose.msra.mxu0 0.0
    %146 = vmatprep.subr.mxu0 0.0
    %147 = vmatpush1.xpose.msra.mxu0 0.0
    %148 = vmatprep.subr.mxu0 0.0
    %149 = vmatpush1.xpose.msra.mxu0 0.0
    %150 = vmatprep.subr.mxu0 0.0
    %151 = vmatpush1.xpose.msra.mxu0 0.0
    %152 = vmatprep.subr.mxu0 0.0
    %153 = vmatpush1.xpose.msra.mxu0 0.0
    %154 = vmatprep.subr.mxu0 0.0
    %155 = vmatpush1.xpose.msra.mxu0 0.0
    %156 = vmatprep.subr.mxu0 0.0
    %157 = vmatpush1.xpose.msra.mxu0 %v47
    %158 = vmatprep.subr.mxu0 0.0
    %159 = vmatpush2.xpose.msra.mxu0 0.0
    %160 = vmatprep.subr.mxu0 0.0
    %161 = vmatpush2.xpose.msra.mxu0 0.0
    %162 = vmatprep.subr.mxu0 0.0
    %163 = vmatpush2.xpose.msra.mxu0 0.0
    %164 = vmatprep.subr.mxu0 0.0
    %165 = vmatpush2.xpose.msra.mxu0 0.0
    %166 = vmatprep.subr.mxu0 0.0
    %167 = vmatpush2.xpose.msra.mxu0 0.0
    %168 = vmatprep.subr.mxu0 0.0
    %169 = vmatpush2.xpose.msra.mxu0 0.0
    %170 = vmatprep.subr.mxu0 0.0
    %171 = vmatpush2.xpose.msra.mxu0 0.0
    %172 = vmatprep.subr.mxu0 0.0
    %173 = vmatpush2.xpose.msra.mxu0 0.0
    %174 = vmatprep.subr.mxu0 0.0
    %175 = vmatpush2.xpose.msra.mxu0 0.0
    %176 = vmatprep.subr.mxu0 0.0
    %177 = vmatpush2.xpose.msra.mxu0 0.0
    %178 = vmatprep.subr.mxu0 0.0
    %179 = vmatpush2.xpose.msra.mxu0 0.0
    %180 = vmatprep.subr.mxu0 0.0
    %181 = vmatpush2.xpose.msra.mxu0 0.0
    %182 = vmatprep.subr.mxu0 0.0
    %183 = vmatpush2.xpose.msra.mxu0 0.0
    %184 = vmatprep.subr.mxu0 0.0
    %185 = vmatpush2.xpose.msra.mxu0 0.0
    %186 = vmatprep.subr.mxu0 0.0
    %187 = vmatpush2.xpose.msra.mxu0 0.0
    %188 = vmatprep.subr.mxu0 0.0
    %189 = vmatpush2.xpose.msra.mxu0 0.0
    %190 = vmatprep.mubr.f32.mxu0 0.0
    %191 = vmatmul.mubr.f32.gmra.mxu0 %v45
    %v192 = vpop.f32.mrf.mxu0
    %v193 = vadd.f32 0.0, %v192
    %v194 = vpop.f32.mrf.mxu0
    %195 = vdwg.mxu0
    %v197 = vlaneseq
    %v198 = vshrl.u32 %v197, 7
    %v199 = vsub.s32 0, %v198
    %v200 = vrot.slane %v48, %v199
    %v202 = vadd.f32 %v52, %v200
    %v203 = vmul.f32 %v123, 2.0
    %v204 = vsub.f32 %v202, %v203
    %v205 = vmax.f32 %v204, 1e-12
    %v206 = vrsqrt.pop %v205
    %v207 = vmul.f32 %v205, %v206
    %vm208 = vcmp.eq.f32.partialorder %v205, inf
    %v209 = vsel %vm208, %v205, %v207
    %vm210 = vcmp.eq.f32.partialorder %v205, 0.0
    %v211 = vand.u32 %v205, 2147483648
    %v212 = vsel %vm210, %v211, %v209
    %v213 = vmul.f32 %v205, %v212
    %v214 = vmul.f32 %v213, -3.0
    %v216 = vlaneseq
    %v217 = vshrl.u32 %v216, 7
    %v218 = vsub.s32 0, %v217
    %v219 = vrot.slane %v49, %v218
    %v221 = vadd.f32 %v55, %v219
    %v222 = vmul.f32 %v193, 2.0
    %v223 = vsub.f32 %v221, %v222
    %v224 = vmax.f32 %v223, 1e-12
    %v225 = vrsqrt.pop %v224
    %v226 = vmul.f32 %v224, %v225
    %vm227 = vcmp.eq.f32.partialorder %v224, inf
    %v228 = vsel %vm227, %v224, %v226
    %vm229 = vcmp.eq.f32.partialorder %v224, 0.0
    %v230 = vand.u32 %v224, 2147483648
    %v231 = vsel %vm229, %v230, %v228
    %v232 = vmul.f32 %v224, %v231
    %v233 = vmul.f32 %v232, -3.0
    %v234 = vlaneseq
    %v235 = vand.u32 %v234, 127
    %v236 = vlaneseq
    %v237 = vshrl.u32 %v236, 7
    %v238 = vstv %s41
    %v239 = vadd.s32 %v238, %v237
    %v241 = vand.u32 %v233, 4294967288
    %v242 = vor.u32 %v241, %v235
    %vm243 = vcmp.eq.s32.totalorder %v235, %v239
    %v244 = vsel %vm243, 2147483647, %v242
    %vm245 = vcmask 64512
    %v246 = vsel %vm245, %v244, 2147483647
    %v247 = vand.u32 %v246, 65535
    %v248 = vshra.s32 %v246, 16
    %v249 = vcvt.s32.f32 %v247
    %v250 = vcvt.s32.f32 %v248
    %251 = vmin.xlane.f32.xlu0 %v250
    %v252 = vpop.xlane.xlu0 %251
    %vm253 = vcmp.eq.f32.partialorder %v250, %v252
    %v254 = vsel %vm253, %v249, inf
    %255 = vmin.xlane.f32.xlu0 %v254
    %v256 = vpop.xlane.xlu0 %255
    %v257 = vcvt.f32.s32 %v256
    %v258 = vcvt.f32.s32 %v252
    %v259 = vshll.u32 %v258, 16
    %v260 = vadd.s32 %v259, %v257
    %vm261 = vcmp.eq.s32.totalorder %v244, %v260
    %v262 = vsel %vm261, %v214, 0.0
    %v263 = vsel %vm245, %v262, 0.0
    %264 = vadd.xlane.f32.xlu0 %v263
    %v265 = vpop.xlane.xlu0 %264
    %v266 = vsel %vm261, 2147483647, %v244
    %v267 = vsel %vm245, %v266, 2147483647
    %v268 = vand.u32 %v267, 65535
    %v269 = vshra.s32 %v267, 16
    %v270 = vcvt.s32.f32 %v268
    %v271 = vcvt.s32.f32 %v269
    %272 = vmin.xlane.f32.xlu0 %v271
    %v273 = vpop.xlane.xlu0 %272
    %vm274 = vcmp.eq.f32.partialorder %v271, %v273
    %v275 = vsel %vm274, %v270, inf
    %276 = vmin.xlane.f32.xlu0 %v275
    %v277 = vpop.xlane.xlu0 %276
    %v278 = vcvt.f32.s32 %v277
    %v279 = vcvt.f32.s32 %v273
    %v280 = vshll.u32 %v279, 16
    %v281 = vadd.s32 %v280, %v278
    %vm282 = vcmp.eq.s32.totalorder %v266, %v281
    %v283 = vsel %vm282, %v214, 0.0
    %v284 = vsel %vm245, %v283, 0.0
    %285 = vadd.xlane.f32.xlu0 %v284
    %v286 = vpop.xlane.xlu0 %285
    %v287 = vsel %vm282, 2147483647, %v266
    %v288 = vsel %vm245, %v287, 2147483647
    %v289 = vand.u32 %v288, 65535
    %v290 = vshra.s32 %v288, 16
    %v291 = vcvt.s32.f32 %v289
    %v292 = vcvt.s32.f32 %v290
    %293 = vmin.xlane.f32.xlu0 %v292
    %v294 = vpop.xlane.xlu0 %293
    %vm295 = vcmp.eq.f32.partialorder %v292, %v294
    %v296 = vsel %vm295, %v291, inf
    %297 = vmin.xlane.f32.xlu0 %v296
    %v298 = vpop.xlane.xlu0 %297
    %v299 = vcvt.f32.s32 %v298
    %v300 = vcvt.f32.s32 %v294
    %v301 = vshll.u32 %v300, 16
    %v302 = vadd.s32 %v301, %v299
    %vm303 = vcmp.eq.s32.totalorder %v287, %v302
    %v304 = vsel %vm303, %v214, 0.0
    %v305 = vsel %vm245, %v304, 0.0
    %306 = vadd.xlane.f32.xlu0 %v305
    %v307 = vpop.xlane.xlu0 %306
    %v308 = vsel %vm303, 2147483647, %v287
    %v309 = vsel %vm245, %v308, 2147483647
    %v310 = vand.u32 %v309, 65535
    %v311 = vshra.s32 %v309, 16
    %v312 = vcvt.s32.f32 %v310
    %v313 = vcvt.s32.f32 %v311
    %314 = vmin.xlane.f32.xlu0 %v313
    %v315 = vpop.xlane.xlu0 %314
    %vm316 = vcmp.eq.f32.partialorder %v313, %v315
    %v317 = vsel %vm316, %v312, inf
    %318 = vmin.xlane.f32.xlu0 %v317
    %v319 = vpop.xlane.xlu0 %318
    %v320 = vcvt.f32.s32 %v319
    %v321 = vcvt.f32.s32 %v315
    %v322 = vshll.u32 %v321, 16
    %v323 = vadd.s32 %v322, %v320
    %vm324 = vcmp.eq.s32.totalorder %v308, %v323
    %v325 = vsel %vm324, %v214, 0.0
    %v326 = vsel %vm245, %v325, 0.0
    %327 = vadd.xlane.f32.xlu0 %v326
    %v328 = vpop.xlane.xlu0 %327
    %v329 = vmax.f32 %v307, %v328
    %v330 = vsub.f32 %v307, %v329
    %v331 = vmul.f32 %v330, 1.442695
    %v332 = vpow.pop %v331
    %v333 = vsub.f32 %v328, %v329
    %v334 = vmul.f32 %v333, 1.442695
    %v335 = vpow.pop %v334
    %v336 = vadd.f32 %v332, %v335
    %v337 = vlog2.pop %v336
    %v338 = vmul.f32 %v337, 0.6931472
    %v339 = vadd.f32 %v329, %v338
    %v340 = vsub.f32 %v307, %v339
    %v341 = vadd.f32 %v340, 0.0
    %v342 = vmax.f32 %v286, %v339
    %v343 = vsub.f32 %v286, %v342
    %v344 = vmul.f32 %v343, 1.442695
    %v345 = vpow.pop %v344
    %v346 = vsub.f32 %v339, %v342
    %v347 = vmul.f32 %v346, 1.442695
    %v348 = vpow.pop %v347
    %v349 = vadd.f32 %v345, %v348
    %v350 = vlog2.pop %v349
    %v351 = vmul.f32 %v350, 0.6931472
    %v352 = vadd.f32 %v342, %v351
    %v353 = vsub.f32 %v286, %v352
    %v354 = vadd.f32 %v341, %v353
    %v355 = vmax.f32 %v265, %v352
    %v356 = vsub.f32 %v265, %v355
    %v357 = vmul.f32 %v356, 1.442695
    %v358 = vpow.pop %v357
    %v359 = vsub.f32 %v352, %v355
    %v360 = vmul.f32 %v359, 1.442695
    %v361 = vpow.pop %v360
    %v362 = vadd.f32 %v358, %v361
    %v363 = vlog2.pop %v362
    %v364 = vmul.f32 %v363, 0.6931472
    %v365 = vadd.f32 %v355, %v364
    %v366 = vsub.f32 %v265, %v365
    %v367 = vadd.f32 %v354, %v366
    %v368 = vsub.f32 0.0, %v367
    %vm369 = vcmask 7168
    %370 = vst.msk [vmem:[%s4] sm:$0xff] %vm369, %v368
    // Predicated region
    $region26: #{tpu_custom_call.1} parent=1 // pred_check
      _
    $region27: #{tpu_custom_call.1} parent=1 // pred_check_branch
      %372 = sbr.rel (0) target = $region29
    $region28: #{tpu_custom_call.1} parent=1 // pred_region
      _
    $region29: #{tpu_custom_call.1} parent=1 // pred_fallthru
      _
    // Predicated region
    $region30: #{tpu_custom_call.1} parent=1 // pred_check
      _
    $region31: #{tpu_custom_call.1} parent=1 // pred_check_branch
      %374 = sbr.rel (0) target = $region33
    $region32: #{tpu_custom_call.1} parent=1 // pred_region
      _
    $region33: #{tpu_custom_call.1} parent=1 // pred_fallthru
      _
    %375 = vsyncpa [#allocation3], 1
    %376 = vsyncpa [#allocation5], 1

</llo_original>
